<compile_context>
chip_gen: v7x
topology: tpu7x:2x2x1
jax: 0.10.0
libtpu: 0.0.40
codegen_flags: <defaults>
</compile_context>

<pallas_src>
import math
import jax
import jax.numpy as jnp
from jax.experimental import pallas as pl
from jax.experimental.pallas import tpu as pltpu


# ------------------------------------------------------------------
# Fused Pallas kernel: ChebConv x2 + 1x1 conv head + log_softmax
# (node-on-lanes / transposed formulation)
# ------------------------------------------------------------------
def make_chebnet_kernel(K1, Cin, nf, label_dim, N):
    twoN = 2 * N
    # static row offsets inside the packed parameter array
    o_w1 = 0
    o_w2 = o_w1 + K1 * nf
    o_b1 = o_w2 + K1 * nf
    o_b2 = o_b1 + 1
    o_wcr = o_b2 + 1
    o_wci = o_wcr + label_dim
    o_bc = o_wci + label_dim

    def kernel(lcwt_ref, xt_ref, prm_ref, o_ref):
        # ---- unpack the tiny parameter block (static slices, one VMEM load) ----
        P = prm_ref[...]                                   # [19, pack_w]
        w1t = P[o_w1:o_w1 + K1 * nf, :Cin]                 # K1 stacked [nf, Cin] blocks
        w2t = P[o_w2:o_w2 + K1 * nf, :nf]                  # K1 stacked [nf, nf]  blocks
        b1 = P[o_b1, :nf]
        b2 = P[o_b2, :nf]
        wcr = P[o_wcr:o_wcr + label_dim, :nf]              # head weights (real part)
        wci = P[o_wci:o_wci + label_dim, :nf]              # head weights (imag part)
        bc = P[o_bc, :label_dim]

        def cheb_layer(xt, wt_stack, bias, cout):
            # YT = sum_k (W[k]^T @ XT) @ LcT[k] + bias[:, None]
            # all matmuls have 2N (=128) lanes in the output -> lane-dense on the MXU.
            yt = jnp.zeros((cout, twoN), jnp.float32)
            for k in range(K1):                            # K1 is tiny (3) -> unrolled
                wk = wt_stack[k * cout:(k + 1) * cout, :]  # [cout, cin]
                zt = jnp.dot(wk, xt, preferred_element_type=jnp.float32)   # [cout, 2N]
                lk = lcwt_ref[k * twoN:(k + 1) * twoN, :]  # [2N, 2N] sublane-aligned
                yt = yt + jnp.dot(zt, lk, preferred_element_type=jnp.float32)
            return yt + bias[:, None]

        y1 = cheb_layer(xt_ref[...], w1t, b1, nf)          # ChebConv layer 1  [nf, 2N]
        y2 = cheb_layer(y1, w2t, b2, nf)                   # ChebConv layer 2  [nf, 2N]

        # 1x1 Conv1d head, already in the transposed [label_dim, N] (NCW) layout:
        #   logits_T = Wc_real @ real^T + Wc_imag @ imag^T + bias
        real_t = y2[:, :N]                                 # [nf, N]
        imag_t = y2[:, N:]                                 # [nf, N]
        logits_t = (jnp.dot(wcr, real_t, preferred_element_type=jnp.float32)
                    + jnp.dot(wci, imag_t, preferred_element_type=jnp.float32)
                    + bc[:, None])                         # [label_dim, N]

        # log_softmax over the label/channel axis (axis 0 in NCW layout)
        m = jnp.max(logits_t, axis=0, keepdims=True)
        z = logits_t - m
        lse = jnp.log(jnp.sum(jnp.exp(z), axis=0, keepdims=True))
        o_ref[...] = (z - lse).astype(o_ref.dtype)

    return kernel


# ------------------------------------------------------------------
# Wrappers
# ------------------------------------------------------------------
def prepare_params(p):
    """One-time preprocessing of the module parameters for the fused kernel."""
    Lr, Li = p["Lr"], p["Li"]
    K1, N, _ = Lr.shape
    assert N % 8 == 0, "node count must be a multiple of 8 for aligned layouts"

    # Block-real Laplacian per k:  Lc[k] = [[Lr, -Li], [Li, Lr]]  (so Lc @ [Xr; Xi]
    # realizes the complex product).  Transposed for the node-on-lanes formulation
    # and sublane-stacked over k:  LcwT = vstack_k(Lc[k]^T)  ->  [(K+1)*2N, 2N].
    top = jnp.concatenate([Lr, -Li], axis=2)
    bot = jnp.concatenate([Li, Lr], axis=2)
    Lc = jnp.concatenate([top, bot], axis=1)               # [K1, 2N, 2N]
    LcwT = jnp.transpose(Lc, (0, 2, 1)).reshape(K1 * 2 * N, 2 * N)

    _, Cin, nf = p["W1"].shape
    label_dim = p["Wc"].shape[0]
    pack_w = max(Cin, nf, label_dim)

    def pad_w(a):  # pad each tiny piece to a common lane width
        return jnp.pad(a, ((0, 0), (0, pack_w - a.shape[1])))

    W1T = jnp.transpose(p["W1"], (0, 2, 1)).reshape(K1 * nf, Cin)   # stacked W1[k]^T
    W2T = jnp.transpose(p["W2"], (0, 2, 1)).reshape(K1 * nf, nf)    # stacked W2[k]^T
    params = jnp.concatenate([
        pad_w(W1T),                                # rows [0, K1*nf)
        pad_w(W2T),                                # rows [K1*nf, 2*K1*nf)
        pad_w(p["b1"].reshape(1, nf)),             # 1 row
        pad_w(p["b2"].reshape(1, nf)),             # 1 row
        pad_w(p["Wc"][:, :nf]),                    # label_dim rows (head, real)
        pad_w(p["Wc"][:, nf:]),                    # label_dim rows (head, imag)
        pad_w(p["bc"].reshape(1, label_dim)),      # 1 row
    ], axis=0)                                     # single tiny [19, pack_w] array

    dims = dict(K1=K1, Cin=Cin, nf=nf, label_dim=label_dim, N=N)
    return dict(LcwT=LcwT, params=params, dims=dims)


def chebnet_benx_forward(real, imag, prep):
    """Full ChebNet_BenX forward (activation=False, dropout=False, layer=2)."""
    dims = prep["dims"]
    N, label_dim = dims["N"], dims["label_dim"]
    # pre-stack + transpose node features once in the wrapper:  XT = [Xr; Xi]^T
    xt = jnp.concatenate([real.T, imag.T], axis=1)         # [Cin, 2N], nodes on lanes
    kernel = make_chebnet_kernel(**dims)
    vmem = pl.BlockSpec(memory_space=pltpu.MemorySpace.VMEM)   # whole array, no grid
    out = pl.pallas_call(
        kernel,
        in_specs=[vmem, vmem, vmem],
        out_specs=vmem,
        out_shape=jax.ShapeDtypeStruct((label_dim, N), real.dtype),
    )(prep["LcwT"], xt, prep["params"])
    # kernel already emits [label_dim, N]; just add the batch dim -> [1, label_dim, N]
    return out[None]


# ------------------------------------------------------------------
# Pure-JAX reference (for sanity check)
# ------------------------------------------------------------------
def cheb_conv_ref(Lr, Li, W, b, Xr, Xi):
    dr = jnp.einsum("knm,mc->knc", Lr, Xr) - jnp.einsum("knm,mc->knc", Li, Xi)
    di = jnp.einsum("knm,mc->knc", Li, Xr) + jnp.einsum("knm,mc->knc", Lr, Xi)
    real = jnp.einsum("knc,kco->no", dr, W) + b
    imag = jnp.einsum("knc,kco->no", di, W) + b
    return real, imag


def chebnet_ref(real, imag, p):
    real, imag = cheb_conv_ref(p["Lr"], p["Li"], p["W1"], p["b1"], real, imag)
    real, imag = cheb_conv_ref(p["Lr"], p["Li"], p["W2"], p["b2"], real, imag)
    x = jnp.concatenate([real, imag], axis=-1)
    logits = x @ p["Wc"].T + p["bc"]
    out = jax.nn.log_softmax(logits, axis=-1)
    return out.T[None, :, :]


# ------------------------------------------------------------------
# Main
# ------------------------------------------------------------------
if __name__ == "__main__":
    # small shapes consistent with the module defaults
    N = 64           # number of graph nodes  (2N = 128 -> exactly one lane width)
    in_c = 4         # input channels
    num_filter = 2   # hidden channels
    K = 2            # Chebyshev order -> K+1 Laplacian terms
    label_dim = 2

    key = jax.random.PRNGKey(0)
    k_lr, k_li, k_x_r, k_x_i, k_w1, k_w2, k_wc, k_bc = jax.random.split(key, 8)

    # normalized Laplacian stacks [K+1, N, N] (synthetic, deterministic)
    Lr = 0.1 * jax.random.normal(k_lr, (K + 1, N, N), dtype=jnp.float32)
    Li = 0.1 * jax.random.normal(k_li, (K + 1, N, N), dtype=jnp.float32)

    # node features [N, in_c]
    x_real = jax.random.normal(k_x_r, (N, in_c), dtype=jnp.float32)
    x_imag = jax.random.normal(k_x_i, (N, in_c), dtype=jnp.float32)

    # ChebConv layer 1 params
    stdv1 = 1.0 / math.sqrt(num_filter)
    W1 = jax.random.uniform(k_w1, (K + 1, in_c, num_filter),
                            minval=-stdv1, maxval=stdv1, dtype=jnp.float32)
    b1 = jnp.zeros((1, num_filter), dtype=jnp.float32)

    # ChebConv layer 2 params
    stdv2 = 1.0 / math.sqrt(num_filter)
    W2 = jax.random.uniform(k_w2, (K + 1, num_filter, num_filter),
                            minval=-stdv2, maxval=stdv2, dtype=jnp.float32)
    b2 = jnp.zeros((1, num_filter), dtype=jnp.float32)

    # 1x1 Conv1d head params (kernel_size=1 squeezed away)
    fan_in = 2 * num_filter
    kb = 1.0 / math.sqrt(fan_in)
    Wc = jax.random.uniform(k_wc, (label_dim, fan_in),
                            minval=-kb, maxval=kb, dtype=jnp.float32)
    bc = jax.random.uniform(k_bc, (1, label_dim),
                            minval=-kb, maxval=kb, dtype=jnp.float32)

    params = dict(Lr=Lr, Li=Li, W1=W1, b1=b1, W2=W2, b2=b2, Wc=Wc, bc=bc)
    prep = prepare_params(params)          # one-time block-real / transposed precompute

    out = chebnet_benx_forward(x_real, x_imag, prep)   # [1, label_dim, N]
    out = jax.block_until_ready(out)

    ref = chebnet_ref(x_real, x_imag, params)
    assert out.shape == (1, label_dim, N), out.shape
    assert jnp.allclose(out, ref, atol=1e-4, rtol=1e-4), float(jnp.max(jnp.abs(out - ref)))

    # TODO(synk): activation (complex_relu) and dropout paths are disabled in the default
    # ChebNet_BenX config (activation=False, dropout=False) and are not implemented here.
    print("KERNEL_OK")
</pallas_src>

<mosaic_0001>
module attributes {stable_mosaic.version = 11 : i64} {
  func.func @kernel(%arg0: memref<384x128xf32, #tpu.memory_space<vmem>>, %arg1: memref<4x128xf32, #tpu.memory_space<vmem>>, %arg2: memref<19x4xf32, #tpu.memory_space<vmem>>, %arg3: memref<2x64xf32, #tpu.memory_space<vmem>>) attributes {dimension_semantics = [], scalar_prefetch = 0 : i64, scratch_operands = 0 : i64, tpu.core_type = #tpu.core_type<tc>} {
    %c0 = arith.constant 0 : index
    %c0_0 = arith.constant 0 : index
    %0 = vector.load %arg2[%c0, %c0_0] : memref<19x4xf32, #tpu.memory_space<vmem>>, vector<19x4xf32>
    %1 = vector.extract_strided_slice %0 {offsets = [0, 0], sizes = [6, 4], strides = [1, 1]} : vector<19x4xf32> to vector<6x4xf32>
    %2 = vector.extract_strided_slice %0 {offsets = [6, 0], sizes = [6, 2], strides = [1, 1]} : vector<19x4xf32> to vector<6x2xf32>
    %3 = vector.extract_strided_slice %0 {offsets = [12, 0], sizes = [1, 2], strides = [1, 1]} : vector<19x4xf32> to vector<1x2xf32>
    %4 = vector.shape_cast %3 : vector<1x2xf32> to vector<2xf32>
    %5 = vector.extract_strided_slice %0 {offsets = [13, 0], sizes = [1, 2], strides = [1, 1]} : vector<19x4xf32> to vector<1x2xf32>
    %6 = vector.shape_cast %5 : vector<1x2xf32> to vector<2xf32>
    %7 = vector.extract_strided_slice %0 {offsets = [14, 0], sizes = [2, 2], strides = [1, 1]} : vector<19x4xf32> to vector<2x2xf32>
    %8 = vector.extract_strided_slice %0 {offsets = [16, 0], sizes = [2, 2], strides = [1, 1]} : vector<19x4xf32> to vector<2x2xf32>
    %9 = vector.extract_strided_slice %0 {offsets = [18, 0], sizes = [1, 2], strides = [1, 1]} : vector<19x4xf32> to vector<1x2xf32>
    %10 = vector.shape_cast %9 : vector<1x2xf32> to vector<2xf32>
    %c0_1 = arith.constant 0 : index
    %c0_2 = arith.constant 0 : index
    %11 = vector.load %arg1[%c0_1, %c0_2] : memref<4x128xf32, #tpu.memory_space<vmem>>, vector<4x128xf32>
    %cst = arith.constant 0.000000e+00 : f32
    %12 = vector.broadcast %cst : f32 to vector<2x128xf32>
    %13 = vector.extract_strided_slice %1 {offsets = [0, 0], sizes = [2, 4], strides = [1, 1]} : vector<6x4xf32> to vector<2x4xf32>
    %cst_3 = arith.constant dense<0.000000e+00> : vector<2x128xf32>
    %14 = tpu.matmul %13, %11, %cst_3 {dimension_numbers = #tpu.dot_dimension_numbers<[1], [0], [0], [1], [0, 0, 1, 1], [], []>} : vector<2x4xf32>, vector<4x128xf32>, vector<2x128xf32> -> vector<2x128xf32>
    %c0_4 = arith.constant 0 : index
    %c0_5 = arith.constant 0 : index
    %15 = vector.load %arg0[%c0_4, %c0_5] : memref<384x128xf32, #tpu.memory_space<vmem>>, vector<128x128xf32>
    %cst_6 = arith.constant dense<0.000000e+00> : vector<2x128xf32>
    %16 = tpu.matmul %14, %15, %cst_6 {dimension_numbers = #tpu.dot_dimension_numbers<[1], [0], [0], [1], [0, 0, 1, 1], [], []>} : vector<2x128xf32>, vector<128x128xf32>, vector<2x128xf32> -> vector<2x128xf32>
    %17 = arith.addf %12, %16 : vector<2x128xf32>
    %18 = vector.extract_strided_slice %1 {offsets = [2, 0], sizes = [2, 4], strides = [1, 1]} : vector<6x4xf32> to vector<2x4xf32>
    %cst_7 = arith.constant dense<0.000000e+00> : vector<2x128xf32>
    %19 = tpu.matmul %18, %11, %cst_7 {dimension_numbers = #tpu.dot_dimension_numbers<[1], [0], [0], [1], [0, 0, 1, 1], [], []>} : vector<2x4xf32>, vector<4x128xf32>, vector<2x128xf32> -> vector<2x128xf32>
    %c128 = arith.constant 128 : index
    %c0_8 = arith.constant 0 : index
    %20 = vector.load %arg0[%c128, %c0_8] : memref<384x128xf32, #tpu.memory_space<vmem>>, vector<128x128xf32>
    %cst_9 = arith.constant dense<0.000000e+00> : vector<2x128xf32>
    %21 = tpu.matmul %19, %20, %cst_9 {dimension_numbers = #tpu.dot_dimension_numbers<[1], [0], [0], [1], [0, 0, 1, 1], [], []>} : vector<2x128xf32>, vector<128x128xf32>, vector<2x128xf32> -> vector<2x128xf32>
    %22 = arith.addf %17, %21 : vector<2x128xf32>
    %23 = vector.extract_strided_slice %1 {offsets = [4, 0], sizes = [2, 4], strides = [1, 1]} : vector<6x4xf32> to vector<2x4xf32>
    %cst_10 = arith.constant dense<0.000000e+00> : vector<2x128xf32>
    %24 = tpu.matmul %23, %11, %cst_10 {dimension_numbers = #tpu.dot_dimension_numbers<[1], [0], [0], [1], [0, 0, 1, 1], [], []>} : vector<2x4xf32>, vector<4x128xf32>, vector<2x128xf32> -> vector<2x128xf32>
    %c256 = arith.constant 256 : index
    %c0_11 = arith.constant 0 : index
    %25 = vector.load %arg0[%c256, %c0_11] : memref<384x128xf32, #tpu.memory_space<vmem>>, vector<128x128xf32>
    %cst_12 = arith.constant dense<0.000000e+00> : vector<2x128xf32>
    %26 = tpu.matmul %24, %25, %cst_12 {dimension_numbers = #tpu.dot_dimension_numbers<[1], [0], [0], [1], [0, 0, 1, 1], [], []>} : vector<2x128xf32>, vector<128x128xf32>, vector<2x128xf32> -> vector<2x128xf32>
    %27 = arith.addf %22, %26 : vector<2x128xf32>
    %28 = vector.shape_cast %4 : vector<2xf32> to vector<2x1xf32>
    %29 = vector.broadcast %28 : vector<2x1xf32> to vector<2x128xf32>
    %30 = arith.addf %27, %29 : vector<2x128xf32>
    %cst_13 = arith.constant 0.000000e+00 : f32
    %31 = vector.broadcast %cst_13 : f32 to vector<2x128xf32>
    %32 = vector.extract_strided_slice %2 {offsets = [0, 0], sizes = [2, 2], strides = [1, 1]} : vector<6x2xf32> to vector<2x2xf32>
    %cst_14 = arith.constant dense<0.000000e+00> : vector<2x128xf32>
    %33 = tpu.matmul %32, %30, %cst_14 {dimension_numbers = #tpu.dot_dimension_numbers<[1], [0], [0], [1], [0, 0, 1, 1], [], []>} : vector<2x2xf32>, vector<2x128xf32>, vector<2x128xf32> -> vector<2x128xf32>
    %c0_15 = arith.constant 0 : index
    %c0_16 = arith.constant 0 : index
    %34 = vector.load %arg0[%c0_15, %c0_16] : memref<384x128xf32, #tpu.memory_space<vmem>>, vector<128x128xf32>
    %cst_17 = arith.constant dense<0.000000e+00> : vector<2x128xf32>
    %35 = tpu.matmul %33, %34, %cst_17 {dimension_numbers = #tpu.dot_dimension_numbers<[1], [0], [0], [1], [0, 0, 1, 1], [], []>} : vector<2x128xf32>, vector<128x128xf32>, vector<2x128xf32> -> vector<2x128xf32>
    %36 = arith.addf %31, %35 : vector<2x128xf32>
    %37 = vector.extract_strided_slice %2 {offsets = [2, 0], sizes = [2, 2], strides = [1, 1]} : vector<6x2xf32> to vector<2x2xf32>
    %cst_18 = arith.constant dense<0.000000e+00> : vector<2x128xf32>
    %38 = tpu.matmul %37, %30, %cst_18 {dimension_numbers = #tpu.dot_dimension_numbers<[1], [0], [0], [1], [0, 0, 1, 1], [], []>} : vector<2x2xf32>, vector<2x128xf32>, vector<2x128xf32> -> vector<2x128xf32>
    %c128_19 = arith.constant 128 : index
    %c0_20 = arith.constant 0 : index
    %39 = vector.load %arg0[%c128_19, %c0_20] : memref<384x128xf32, #tpu.memory_space<vmem>>, vector<128x128xf32>
    %cst_21 = arith.constant dense<0.000000e+00> : vector<2x128xf32>
    %40 = tpu.matmul %38, %39, %cst_21 {dimension_numbers = #tpu.dot_dimension_numbers<[1], [0], [0], [1], [0, 0, 1, 1], [], []>} : vector<2x128xf32>, vector<128x128xf32>, vector<2x128xf32> -> vector<2x128xf32>
    %41 = arith.addf %36, %40 : vector<2x128xf32>
    %42 = vector.extract_strided_slice %2 {offsets = [4, 0], sizes = [2, 2], strides = [1, 1]} : vector<6x2xf32> to vector<2x2xf32>
    %cst_22 = arith.constant dense<0.000000e+00> : vector<2x128xf32>
    %43 = tpu.matmul %42, %30, %cst_22 {dimension_numbers = #tpu.dot_dimension_numbers<[1], [0], [0], [1], [0, 0, 1, 1], [], []>} : vector<2x2xf32>, vector<2x128xf32>, vector<2x128xf32> -> vector<2x128xf32>
    %c256_23 = arith.constant 256 : index
    %c0_24 = arith.constant 0 : index
    %44 = vector.load %arg0[%c256_23, %c0_24] : memref<384x128xf32, #tpu.memory_space<vmem>>, vector<128x128xf32>
    %cst_25 = arith.constant dense<0.000000e+00> : vector<2x128xf32>
    %45 = tpu.matmul %43, %44, %cst_25 {dimension_numbers = #tpu.dot_dimension_numbers<[1], [0], [0], [1], [0, 0, 1, 1], [], []>} : vector<2x128xf32>, vector<128x128xf32>, vector<2x128xf32> -> vector<2x128xf32>
    %46 = arith.addf %41, %45 : vector<2x128xf32>
    %47 = vector.shape_cast %6 : vector<2xf32> to vector<2x1xf32>
    %48 = vector.broadcast %47 : vector<2x1xf32> to vector<2x128xf32>
    %49 = arith.addf %46, %48 : vector<2x128xf32>
    %50 = vector.extract_strided_slice %49 {offsets = [0, 0], sizes = [2, 64], strides = [1, 1]} : vector<2x128xf32> to vector<2x64xf32>
    %51 = vector.extract_strided_slice %49 {offsets = [0, 64], sizes = [2, 64], strides = [1, 1]} : vector<2x128xf32> to vector<2x64xf32>
    %cst_26 = arith.constant dense<0.000000e+00> : vector<2x64xf32>
    %52 = tpu.matmul %7, %50, %cst_26 {dimension_numbers = #tpu.dot_dimension_numbers<[1], [0], [0], [1], [0, 0, 1, 1], [], []>} : vector<2x2xf32>, vector<2x64xf32>, vector<2x64xf32> -> vector<2x64xf32>
    %cst_27 = arith.constant dense<0.000000e+00> : vector<2x64xf32>
    %53 = tpu.matmul %8, %51, %cst_27 {dimension_numbers = #tpu.dot_dimension_numbers<[1], [0], [0], [1], [0, 0, 1, 1], [], []>} : vector<2x2xf32>, vector<2x64xf32>, vector<2x64xf32> -> vector<2x64xf32>
    %54 = arith.addf %52, %53 : vector<2x64xf32>
    %55 = vector.shape_cast %10 : vector<2xf32> to vector<2x1xf32>
    %56 = vector.broadcast %55 : vector<2x1xf32> to vector<2x64xf32>
    %57 = arith.addf %54, %56 : vector<2x64xf32>
    %cst_28 = arith.constant dense<0xFF800000> : vector<64xf32>
    %58 = vector.multi_reduction <maximumf>, %57, %cst_28 [0] : vector<2x64xf32> to vector<64xf32>
    %59 = vector.shape_cast %58 : vector<64xf32> to vector<1x64xf32>
    %60 = vector.broadcast %59 : vector<1x64xf32> to vector<2x64xf32>
    %61 = arith.subf %57, %60 : vector<2x64xf32>
    %62 = math.exp %61 : vector<2x64xf32>
    %cst_29 = arith.constant dense<0.000000e+00> : vector<64xf32>
    %63 = vector.multi_reduction <add>, %62, %cst_29 [0] : vector<2x64xf32> to vector<64xf32>
    %64 = vector.shape_cast %63 : vector<64xf32> to vector<1x64xf32>
    %65 = math.log %64 : vector<1x64xf32>
    %66 = vector.broadcast %65 : vector<1x64xf32> to vector<2x64xf32>
    %67 = arith.subf %61, %66 : vector<2x64xf32>
    %c0_30 = arith.constant 0 : index
    %c0_31 = arith.constant 0 : index
    %68 = vector.load %arg3[%c0_30, %c0_31] : memref<2x64xf32, #tpu.memory_space<vmem>>, vector<2x64xf32>
    tpu.vector_store %arg3[%c0_30, %c0_31], %67 {strides = array<i32>} : memref<2x64xf32, #tpu.memory_space<vmem>>, vector<2x64xf32>,
    return
  }
}

</mosaic_0001>

<llo_original>
// kernel: tpu_custom_call.1
$region0: #{tpu_custom_call.1}
  #allocation0 [shape = 'u32[]', space=smem, size = 0x4, offset = 0x4, fixed_abs, tag = 'smem constant byte address 0x4 - core index']
  #allocation1 [shape = 'u32[144,128]{1,0:T(1,128)}', space=vmem, size = 0x12000, scoped, tag = 'internal scratch']
  %s0 = inlined_call_operand.hbm [shape: f32[384,128], index: 0, kind: input, shape index: {}]
  %s1 = inlined_call_operand.vmem [shape: f32[4,128], index: 1, kind: input, shape index: {}]
  %s2 = inlined_call_operand.vmem [shape: f32[19,4], index: 2, kind: input, shape index: {}]
  %s3 = inlined_call_operand.hbm [shape: f32[2,64], index: 3, kind: output, shape index: {}]
  %s4 = sld [smem:[#allocation0]]
  $region26: #{tpu_custom_call.1} parent=0
    _
  %s6 = ssub.s32 1, %s4
  %s7 = scalar_select 0, %s6, %s4
  $region1: #{tpu_custom_call.1} parent=0
    #allocation2 [shape = 'u8[196608]{0}', space=vmem, size = 0x30000, scoped, tag = 'input window, operand 0, single buffered']
    #allocation3 [shape = 's32[1]{0}', space=sflag, size = 0x4, scoped, tag = 'scoped memory for tpu_custom_call.1']
    #allocation4 [shape = 's32[1]{0}', space=sflag, size = 0x4, scoped, tag = 'scoped memory for tpu_custom_call.1']
    #allocation5 [shape = 'u8[1024]{0}', space=vmem, size = 0x400, scoped, tag = 'output window, operand 0, single buffered']
    %8 = vsyncpa [#allocation3], 0
    %9 = vsyncpa [#allocation4], 0
    // Predicated region
    $region2: #{tpu_custom_call.1} parent=1 // pred_check
      _
    $region3: #{tpu_custom_call.1} parent=1 // pred_check_branch
      %11 = sbr.rel (0) target = $region5
    $region4: #{tpu_custom_call.1} parent=1 // pred_region
      %s13 = ssub.s32 6144, 6144
      %14 = vsyncadd [#allocation3], %s13
      %s15 = sshll.u32 [#allocation2], 4
      %s16 = int_to_ptr.vmem [resolvable:$true] %s15
      %21 = dma.hbm_to_vmem [thread:$0]  %s0, 6144, %s16, [#allocation3], 128, 128, 8
    $region5: #{tpu_custom_call.1} parent=1 // pred_fallthru
      _
    // Predicated region
    $region6: #{tpu_custom_call.1} parent=1 // pred_check
      _
    $region7: #{tpu_custom_call.1} parent=1 // pred_check_branch
      %23 = sbr.rel (0) target = $region9
    $region8: #{tpu_custom_call.1} parent=1 // pred_region
      _
    $region9: #{tpu_custom_call.1} parent=1 // pred_fallthru
      _
    // Predicated region
    $region10: #{tpu_custom_call.1} parent=1 // pred_check
      _
    $region11: #{tpu_custom_call.1} parent=1 // pred_check_branch
      %25 = sbr.rel (0) target = $region13
    $region12: #{tpu_custom_call.1} parent=1 // pred_region
      _
    $region13: #{tpu_custom_call.1} parent=1 // pred_fallthru
      _
    // Predicated region
    $region14: #{tpu_custom_call.1} parent=1 // pred_check
      _
    $region15: #{tpu_custom_call.1} parent=1 // pred_check_branch
      %27 = sbr.rel (0) target = $region17
    $region16: #{tpu_custom_call.1} parent=1 // pred_region
      %28 = dma.done [#allocation3], 6144
    $region17: #{tpu_custom_call.1} parent=1 // pred_fallthru
      _
    %v29 = vld [vmem:[%s2] sm:$0xff]
    %v30 = vld [vmem:[%s2 + $0x8] sm:$0xff]
    %v31 = vld [vmem:[%s2 + $0x10] sm:$0x7]
    %v32 = vld [vmem:[%s1] sm:$0xf]
    %vm33 = vcmask 31744
    %v35 = vsel %vm33, %v29, 0
    %vm37 = vcmask 1043456
    %v39 = vsel %vm37, %v32, 0
    %41 = vmatprep.subr.mxu0 0.0
    %42 = vmatpush1.msra.mxu0 %v39
    %43 = vmatprep.subr.mxu0 0.0
    %44 = vmatpush1.msra.mxu0 0.0
    %45 = vmatprep.subr.mxu0 0.0
    %46 = vmatpush1.msra.mxu0 0.0
    %47 = vmatprep.subr.mxu0 0.0
    %48 = vmatpush1.msra.mxu0 0.0
    %49 = vmatprep.subr.mxu0 0.0
    %50 = vmatpush1.msra.mxu0 0.0
    %51 = vmatprep.subr.mxu0 0.0
    %52 = vmatpush1.msra.mxu0 0.0
    %53 = vmatprep.subr.mxu0 0.0
    %54 = vmatpush1.msra.mxu0 0.0
    %55 = vmatprep.subr.mxu0 0.0
    %56 = vmatpush1.msra.mxu0 0.0
    %57 = vmatprep.subr.mxu0 0.0
    %58 = vmatpush1.msra.mxu0 0.0
    %59 = vmatprep.subr.mxu0 0.0
    %60 = vmatpush1.msra.mxu0 0.0
    %61 = vmatprep.subr.mxu0 0.0
    %62 = vmatpush1.msra.mxu0 0.0
    %63 = vmatprep.subr.mxu0 0.0
    %64 = vmatpush1.msra.mxu0 0.0
    %65 = vmatprep.subr.mxu0 0.0
    %66 = vmatpush1.msra.mxu0 0.0
    %67 = vmatprep.subr.mxu0 0.0
    %68 = vmatpush1.msra.mxu0 0.0
    %69 = vmatprep.subr.mxu0 0.0
    %70 = vmatpush1.msra.mxu0 0.0
    %71 = vmatprep.subr.mxu0 0.0
    %72 = vmatpush1.msra.mxu0 0.0
    %73 = vmatprep.subr.mxu0 0.0
    %74 = vmatpush1.msra.mxu0 0.0
    %75 = vmatprep.subr.mxu0 0.0
    %76 = vmatpush1.msra.mxu0 0.0
    %77 = vmatprep.subr.mxu0 0.0
    %78 = vmatpush1.msra.mxu0 0.0
    %79 = vmatprep.subr.mxu0 0.0
    %80 = vmatpush1.msra.mxu0 0.0
    %81 = vmatprep.subr.mxu0 0.0
    %82 = vmatpush1.msra.mxu0 0.0
    %83 = vmatprep.subr.mxu0 0.0
    %84 = vmatpush1.msra.mxu0 0.0
    %85 = vmatprep.subr.mxu0 0.0
    %86 = vmatpush1.msra.mxu0 0.0
    %87 = vmatprep.subr.mxu0 0.0
    %88 = vmatpush1.msra.mxu0 0.0
    %89 = vmatprep.subr.mxu0 0.0
    %90 = vmatpush1.msra.mxu0 0.0
    %91 = vmatprep.subr.mxu0 0.0
    %92 = vmatpush1.msra.mxu0 0.0
    %93 = vmatprep.subr.mxu0 0.0
    %94 = vmatpush1.msra.mxu0 0.0
    %95 = vmatprep.subr.mxu0 0.0
    %96 = vmatpush1.msra.mxu0 0.0
    %97 = vmatprep.subr.mxu0 0.0
    %98 = vmatpush1.msra.mxu0 0.0
    %99 = vmatprep.subr.mxu0 0.0
    %100 = vmatpush1.msra.mxu0 0.0
    %101 = vmatprep.subr.mxu0 0.0
    %102 = vmatpush1.msra.mxu0 0.0
    %103 = vmatprep.subr.mxu0 0.0
    %104 = vmatpush1.msra.mxu0 0.0
    %105 = vmatprep.mubr.f32.mxu0 0.0
    %106 = vmatmul.mubr.f32.gmra.mrb[0].mxu0 %v35
    %v107 = vpop.f32.mrb[0].mxu0
    %v108 = vadd.f32 0.0, %v107
    %v109 = vpop.f32.mrb[0].mxu0
    %110 = vdwg.mxu0
    %v111 = vld [vmem:[#allocation2] sm:$0xff]
    %v112 = vld [vmem:[#allocation2 + $0x8] sm:$0xff]
    %v113 = vld [vmem:[#allocation2 + $0x10] sm:$0xff]
    %v114 = vld [vmem:[#allocation2 + $0x18] sm:$0xff]
    %v115 = vld [vmem:[#allocation2 + $0x20] sm:$0xff]
    %v116 = vld [vmem:[#allocation2 + $0x28] sm:$0xff]
    %v117 = vld [vmem:[#allocation2 + $0x30] sm:$0xff]
    %v118 = vld [vmem:[#allocation2 + $0x38] sm:$0xff]
    %v119 = vld [vmem:[#allocation2 + $0x40] sm:$0xff]
    %v120 = vld [vmem:[#allocation2 + $0x48] sm:$0xff]
    %v121 = vld [vmem:[#allocation2 + $0x50] sm:$0xff]
    %v122 = vld [vmem:[#allocation2 + $0x58] sm:$0xff]
    %v123 = vld [vmem:[#allocation2 + $0x60] sm:$0xff]
    %v124 = vld [vmem:[#allocation2 + $0x68] sm:$0xff]
    %v125 = vld [vmem:[#allocation2 + $0x70] sm:$0xff]
    %v126 = vld [vmem:[#allocation2 + $0x78] sm:$0xff]
    %v127 = vrot.slane %v29, 2
    %v128 = vsel %vm33, %v127, 0
    %130 = vmatprep.subr.mxu0 0.0
    %131 = vmatpush1.msra.mxu0 %v39
    %132 = vmatprep.subr.mxu0 0.0
    %133 = vmatpush1.msra.mxu0 0.0
    %134 = vmatprep.subr.mxu0 0.0
    %135 = vmatpush1.msra.mxu0 0.0
    %136 = vmatprep.subr.mxu0 0.0
    %137 = vmatpush1.msra.mxu0 0.0
    %138 = vmatprep.subr.mxu0 0.0
    %139 = vmatpush1.msra.mxu0 0.0
    %140 = vmatprep.subr.mxu0 0.0
    %141 = vmatpush1.msra.mxu0 0.0
    %142 = vmatprep.subr.mxu0 0.0
    %143 = vmatpush1.msra.mxu0 0.0
    %144 = vmatprep.subr.mxu0 0.0
    %145 = vmatpush1.msra.mxu0 0.0
    %146 = vmatprep.subr.mxu0 0.0
    %147 = vmatpush1.msra.mxu0 0.0
    %148 = vmatprep.subr.mxu0 0.0
    %149 = vmatpush1.msra.mxu0 0.0
    %150 = vmatprep.subr.mxu0 0.0
    %151 = vmatpush1.msra.mxu0 0.0
    %152 = vmatprep.subr.mxu0 0.0
    %153 = vmatpush1.msra.mxu0 0.0
    %154 = vmatprep.subr.mxu0 0.0
    %155 = vmatpush1.msra.mxu0 0.0
    %156 = vmatprep.subr.mxu0 0.0
    %157 = vmatpush1.msra.mxu0 0.0
    %158 = vmatprep.subr.mxu0 0.0
    %159 = vmatpush1.msra.mxu0 0.0
    %160 = vmatprep.subr.mxu0 0.0
    %161 = vmatpush1.msra.mxu0 0.0
    %162 = vmatprep.subr.mxu0 0.0
    %163 = vmatpush1.msra.mxu0 0.0
    %164 = vmatprep.subr.mxu0 0.0
    %165 = vmatpush1.msra.mxu0 0.0
    %166 = vmatprep.subr.mxu0 0.0
    %167 = vmatpush1.msra.mxu0 0.0
    %168 = vmatprep.subr.mxu0 0.0
    %169 = vmatpush1.msra.mxu0 0.0
    %170 = vmatprep.subr.mxu0 0.0
    %171 = vmatpush1.msra.mxu0 0.0
    %172 = vmatprep.subr.mxu0 0.0
    %173 = vmatpush1.msra.mxu0 0.0
    %174 = vmatprep.subr.mxu0 0.0
    %175 = vmatpush1.msra.mxu0 0.0
    %176 = vmatprep.subr.mxu0 0.0
    %177 = vmatpush1.msra.mxu0 0.0
    %178 = vmatprep.subr.mxu0 0.0
    %179 = vmatpush1.msra.mxu0 0.0
    %180 = vmatprep.subr.mxu0 0.0
    %181 = vmatpush1.msra.mxu0 0.0
    %182 = vmatprep.subr.mxu0 0.0
    %183 = vmatpush1.msra.mxu0 0.0
    %184 = vmatprep.subr.mxu0 0.0
    %185 = vmatpush1.msra.mxu0 0.0
    %186 = vmatprep.subr.mxu0 0.0
    %187 = vmatpush1.msra.mxu0 0.0
    %188 = vmatprep.subr.mxu0 0.0
    %189 = vmatpush1.msra.mxu0 0.0
    %190 = vmatprep.subr.mxu0 0.0
    %191 = vmatpush1.msra.mxu0 0.0
    %192 = vmatprep.subr.mxu0 0.0
    %193 = vmatpush1.msra.mxu0 0.0
    %194 = vmatprep.mubr.f32.mxu0 0.0
    %195 = vmatmul.mubr.f32.gmra.mrb[0].mxu0 %v128
    %v196 = vpop.f32.mrb[0].mxu0
    %v197 = vadd.f32 0.0, %v196
    %v198 = vpop.f32.mrb[0].mxu0
    %199 = vdwg.mxu0
    %v200 = vld [vmem:[#allocation2 + $0x80] sm:$0xff]
    %v201 = vld [vmem:[#allocation2 + $0x88] sm:$0xff]
    %v202 = vld [vmem:[#allocation2 + $0x90] sm:$0xff]
    %v203 = vld [vmem:[#allocation2 + $0x98] sm:$0xff]
    %v204 = vld [vmem:[#allocation2 + $0xa0] sm:$0xff]
    %v205 = vld [vmem:[#allocation2 + $0xa8] sm:$0xff]
    %v206 = vld [vmem:[#allocation2 + $0xb0] sm:$0xff]
    %v207 = vld [vmem:[#allocation2 + $0xb8] sm:$0xff]
    %v208 = vld [vmem:[#allocation2 + $0xc0] sm:$0xff]
    %v209 = vld [vmem:[#allocation2 + $0xc8] sm:$0xff]
    %v210 = vld [vmem:[#allocation2 + $0xd0] sm:$0xff]
    %v211 = vld [vmem:[#allocation2 + $0xd8] sm:$0xff]
    %v212 = vld [vmem:[#allocation2 + $0xe0] sm:$0xff]
    %v213 = vld [vmem:[#allocation2 + $0xe8] sm:$0xff]
    %v214 = vld [vmem:[#allocation2 + $0xf0] sm:$0xff]
    %v215 = vld [vmem:[#allocation2 + $0xf8] sm:$0xff]
    %216 = vmatprep.subr.mxu0 0.0
    %217 = vmatpush1.msra.mxu0 %v200
    %218 = vmatprep.subr.mxu0 0.0
    %219 = vmatpush1.msra.mxu0 %v201
    %220 = vmatprep.subr.mxu0 0.0
    %221 = vmatpush1.msra.mxu0 %v202
    %222 = vmatprep.subr.mxu0 0.0
    %223 = vmatpush1.msra.mxu0 %v203
    %224 = vmatprep.subr.mxu0 0.0
    %225 = vmatpush1.msra.mxu0 %v204
    %226 = vmatprep.subr.mxu0 0.0
    %227 = vmatpush1.msra.mxu0 %v205
    %228 = vmatprep.subr.mxu0 0.0
    %229 = vmatpush1.msra.mxu0 %v206
    %230 = vmatprep.subr.mxu0 0.0
    %231 = vmatpush1.msra.mxu0 %v207
    %232 = vmatprep.subr.mxu0 0.0
    %233 = vmatpush1.msra.mxu0 %v208
    %234 = vmatprep.subr.mxu0 0.0
    %235 = vmatpush1.msra.mxu0 %v209
    %236 = vmatprep.subr.mxu0 0.0
    %237 = vmatpush1.msra.mxu0 %v210
    %238 = vmatprep.subr.mxu0 0.0
    %239 = vmatpush1.msra.mxu0 %v211
    %240 = vmatprep.subr.mxu0 0.0
    %241 = vmatpush1.msra.mxu0 %v212
    %242 = vmatprep.subr.mxu0 0.0
    %243 = vmatpush1.msra.mxu0 %v213
    %244 = vmatprep.subr.mxu0 0.0
    %245 = vmatpush1.msra.mxu0 %v214
    %246 = vmatprep.subr.mxu0 0.0
    %247 = vmatpush1.msra.mxu0 %v215
    %248 = vmatprep.subr.mxu0 0.0
    %249 = vmatpush1.msra.mxu0 0.0
    %250 = vmatprep.subr.mxu0 0.0
    %251 = vmatpush1.msra.mxu0 0.0
    %252 = vmatprep.subr.mxu0 0.0
    %253 = vmatpush1.msra.mxu0 0.0
    %254 = vmatprep.subr.mxu0 0.0
    %255 = vmatpush1.msra.mxu0 0.0
    %256 = vmatprep.subr.mxu0 0.0
    %257 = vmatpush1.msra.mxu0 0.0
    %258 = vmatprep.subr.mxu0 0.0
    %259 = vmatpush1.msra.mxu0 0.0
    %260 = vmatprep.subr.mxu0 0.0
    %261 = vmatpush1.msra.mxu0 0.0
    %262 = vmatprep.subr.mxu0 0.0
    %263 = vmatpush1.msra.mxu0 0.0
    %264 = vmatprep.subr.mxu0 0.0
    %265 = vmatpush1.msra.mxu0 0.0
    %266 = vmatprep.subr.mxu0 0.0
    %267 = vmatpush1.msra.mxu0 0.0
    %268 = vmatprep.subr.mxu0 0.0
    %269 = vmatpush1.msra.mxu0 0.0
    %270 = vmatprep.subr.mxu0 0.0
    %271 = vmatpush1.msra.mxu0 0.0
    %272 = vmatprep.subr.mxu0 0.0
    %273 = vmatpush1.msra.mxu0 0.0
    %274 = vmatprep.subr.mxu0 0.0
    %275 = vmatpush1.msra.mxu0 0.0
    %276 = vmatprep.subr.mxu0 0.0
    %277 = vmatpush1.msra.mxu0 0.0
    %278 = vmatprep.subr.mxu0 0.0
    %279 = vmatpush1.msra.mxu0 0.0
    %280 = vmatprep.mubr.f32.mxu0 0.0
    %281 = vmatmul.mubr.f32.gmra.mrb[0].mxu0 %v197
    %v282 = vpop.f32.mrb[0].mxu0
    %v283 = vadd.f32 0.0, %v282
    %v284 = vpop.f32.mrb[0].mxu0
    %285 = vdwg.mxu0
    %286 = vmatprep.subr.mxu0 0.0
    %287 = vmatpush1.msra.mxu0 %v111
    %288 = vmatprep.subr.mxu0 0.0
    %289 = vmatpush1.msra.mxu0 %v112
    %290 = vmatprep.subr.mxu0 0.0
    %291 = vmatpush1.msra.mxu0 %v113
    %292 = vmatprep.subr.mxu0 0.0
    %293 = vmatpush1.msra.mxu0 %v114
    %294 = vmatprep.subr.mxu0 0.0
    %295 = vmatpush1.msra.mxu0 %v115
    %296 = vmatprep.subr.mxu0 0.0
    %297 = vmatpush1.msra.mxu0 %v116
    %298 = vmatprep.subr.mxu0 0.0
    %299 = vmatpush1.msra.mxu0 %v117
    %300 = vmatprep.subr.mxu0 0.0
    %301 = vmatpush1.msra.mxu0 %v118
    %302 = vmatprep.subr.mxu0 0.0
    %303 = vmatpush1.msra.mxu0 %v119
    %304 = vmatprep.subr.mxu0 0.0
    %305 = vmatpush1.msra.mxu0 %v120
    %306 = vmatprep.subr.mxu0 0.0
    %307 = vmatpush1.msra.mxu0 %v121
    %308 = vmatprep.subr.mxu0 0.0
    %309 = vmatpush1.msra.mxu0 %v122
    %310 = vmatprep.subr.mxu0 0.0
    %311 = vmatpush1.msra.mxu0 %v123
    %312 = vmatprep.subr.mxu0 0.0
    %313 = vmatpush1.msra.mxu0 %v124
    %314 = vmatprep.subr.mxu0 0.0
    %315 = vmatpush1.msra.mxu0 %v125
    %316 = vmatprep.subr.mxu0 0.0
    %317 = vmatpush1.msra.mxu0 %v126
    %318 = vmatprep.subr.mxu0 0.0
    %319 = vmatpush1.msra.mxu0 0.0
    %320 = vmatprep.subr.mxu0 0.0
    %321 = vmatpush1.msra.mxu0 0.0
    %322 = vmatprep.subr.mxu0 0.0
    %323 = vmatpush1.msra.mxu0 0.0
    %324 = vmatprep.subr.mxu0 0.0
    %325 = vmatpush1.msra.mxu0 0.0
    %326 = vmatprep.subr.mxu0 0.0
    %327 = vmatpush1.msra.mxu0 0.0
    %328 = vmatprep.subr.mxu0 0.0
    %329 = vmatpush1.msra.mxu0 0.0
    %330 = vmatprep.subr.mxu0 0.0
    %331 = vmatpush1.msra.mxu0 0.0
    %332 = vmatprep.subr.mxu0 0.0
    %333 = vmatpush1.msra.mxu0 0.0
    %334 = vmatprep.subr.mxu0 0.0
    %335 = vmatpush1.msra.mxu0 0.0
    %336 = vmatprep.subr.mxu0 0.0
    %337 = vmatpush1.msra.mxu0 0.0
    %338 = vmatprep.subr.mxu0 0.0
    %339 = vmatpush1.msra.mxu0 0.0
    %340 = vmatprep.subr.mxu0 0.0
    %341 = vmatpush1.msra.mxu0 0.0
    %342 = vmatprep.subr.mxu0 0.0
    %343 = vmatpush1.msra.mxu0 0.0
    %344 = vmatprep.subr.mxu0 0.0
    %345 = vmatpush1.msra.mxu0 0.0
    %346 = vmatprep.subr.mxu0 0.0
    %347 = vmatpush1.msra.mxu0 0.0
    %348 = vmatprep.subr.mxu0 0.0
    %349 = vmatpush1.msra.mxu0 0.0
    %350 = vmatprep.mubr.f32.mxu0 0.0
    %351 = vmatmul.mubr.f32.gmra.mrb[0].mxu0 %v108
    %v352 = vpop.f32.mrb[0].mxu0
    %v353 = vadd.f32 %v283, %v352
    %v354 = vpop.f32.mrb[0].mxu0
    %355 = vdwg.mxu0
    %v356 = vrot.slane %v29, 4
    %v357 = vsel %vm33, %v356, 0
    %359 = vmatprep.subr.mxu0 0.0
    %360 = vmatpush1.msra.mxu0 %v39
    %361 = vmatprep.subr.mxu0 0.0
    %362 = vmatpush1.msra.mxu0 0.0
    %363 = vmatprep.subr.mxu0 0.0
    %364 = vmatpush1.msra.mxu0 0.0
    %365 = vmatprep.subr.mxu0 0.0
    %366 = vmatpush1.msra.mxu0 0.0
    %367 = vmatprep.subr.mxu0 0.0
    %368 = vmatpush1.msra.mxu0 0.0
    %369 = vmatprep.subr.mxu0 0.0
    %370 = vmatpush1.msra.mxu0 0.0
    %371 = vmatprep.subr.mxu0 0.0
    %372 = vmatpush1.msra.mxu0 0.0
    %373 = vmatprep.subr.mxu0 0.0
    %374 = vmatpush1.msra.mxu0 0.0
    %375 = vmatprep.subr.mxu0 0.0
    %376 = vmatpush1.msra.mxu0 0.0
    %377 = vmatprep.subr.mxu0 0.0
    %378 = vmatpush1.msra.mxu0 0.0
    %379 = vmatprep.subr.mxu0 0.0
    %380 = vmatpush1.msra.mxu0 0.0
    %381 = vmatprep.subr.mxu0 0.0
    %382 = vmatpush1.msra.mxu0 0.0
    %383 = vmatprep.subr.mxu0 0.0
    %384 = vmatpush1.msra.mxu0 0.0
    %385 = vmatprep.subr.mxu0 0.0
    %386 = vmatpush1.msra.mxu0 0.0
    %387 = vmatprep.subr.mxu0 0.0
    %388 = vmatpush1.msra.mxu0 0.0
    %389 = vmatprep.subr.mxu0 0.0
    %390 = vmatpush1.msra.mxu0 0.0
    %391 = vmatprep.subr.mxu0 0.0
    %392 = vmatpush1.msra.mxu0 0.0
    %393 = vmatprep.subr.mxu0 0.0
    %394 = vmatpush1.msra.mxu0 0.0
    %395 = vmatprep.subr.mxu0 0.0
    %396 = vmatpush1.msra.mxu0 0.0
    %397 = vmatprep.subr.mxu0 0.0
    %398 = vmatpush1.msra.mxu0 0.0
    %399 = vmatprep.subr.mxu0 0.0
    %400 = vmatpush1.msra.mxu0 0.0
    %401 = vmatprep.subr.mxu0 0.0
    %402 = vmatpush1.msra.mxu0 0.0
    %403 = vmatprep.subr.mxu0 0.0
    %404 = vmatpush1.msra.mxu0 0.0
    %405 = vmatprep.subr.mxu0 0.0
    %406 = vmatpush1.msra.mxu0 0.0
    %407 = vmatprep.subr.mxu0 0.0
    %408 = vmatpush1.msra.mxu0 0.0
    %409 = vmatprep.subr.mxu0 0.0
    %410 = vmatpush1.msra.mxu0 0.0
    %411 = vmatprep.subr.mxu0 0.0
    %412 = vmatpush1.msra.mxu0 0.0
    %413 = vmatprep.subr.mxu0 0.0
    %414 = vmatpush1.msra.mxu0 0.0
    %415 = vmatprep.subr.mxu0 0.0
    %416 = vmatpush1.msra.mxu0 0.0
    %417 = vmatprep.subr.mxu0 0.0
    %418 = vmatpush1.msra.mxu0 0.0
    %419 = vmatprep.subr.mxu0 0.0
    %420 = vmatpush1.msra.mxu0 0.0
    %421 = vmatprep.subr.mxu0 0.0
    %422 = vmatpush1.msra.mxu0 0.0
    %423 = vmatprep.mubr.f32.mxu0 0.0
    %424 = vmatmul.mubr.f32.gmra.mrb[0].mxu0 %v357
    %v425 = vpop.f32.mrb[0].mxu0
    %v426 = vadd.f32 0.0, %v425
    %v427 = vpop.f32.mrb[0].mxu0
    %428 = vdwg.mxu0
    %v429 = vld [vmem:[#allocation2 + $0x100] sm:$0xff]
    %v430 = vld [vmem:[#allocation2 + $0x108] sm:$0xff]
    %v431 = vld [vmem:[#allocation2 + $0x110] sm:$0xff]
    %v432 = vld [vmem:[#allocation2 + $0x118] sm:$0xff]
    %v433 = vld [vmem:[#allocation2 + $0x120] sm:$0xff]
    %v434 = vld [vmem:[#allocation2 + $0x128] sm:$0xff]
    %v435 = vld [vmem:[#allocation2 + $0x130] sm:$0xff]
    %v436 = vld [vmem:[#allocation2 + $0x138] sm:$0xff]
    %v437 = vld [vmem:[#allocation2 + $0x140] sm:$0xff]
    %v438 = vld [vmem:[#allocation2 + $0x148] sm:$0xff]
    %v439 = vld [vmem:[#allocation2 + $0x150] sm:$0xff]
    %v440 = vld [vmem:[#allocation2 + $0x158] sm:$0xff]
    %v441 = vld [vmem:[#allocation2 + $0x160] sm:$0xff]
    %v442 = vld [vmem:[#allocation2 + $0x168] sm:$0xff]
    %v443 = vld [vmem:[#allocation2 + $0x170] sm:$0xff]
    %v444 = vld [vmem:[#allocation2 + $0x178] sm:$0xff]
    %445 = vmatprep.subr.mxu0 0.0
    %446 = vmatpush1.msra.mxu0 %v429
    %447 = vmatprep.subr.mxu0 0.0
    %448 = vmatpush1.msra.mxu0 %v430
    %449 = vmatprep.subr.mxu0 0.0
    %450 = vmatpush1.msra.mxu0 %v431
    %451 = vmatprep.subr.mxu0 0.0
    %452 = vmatpush1.msra.mxu0 %v432
    %453 = vmatprep.subr.mxu0 0.0
    %454 = vmatpush1.msra.mxu0 %v433
    %455 = vmatprep.subr.mxu0 0.0
    %456 = vmatpush1.msra.mxu0 %v434
    %457 = vmatprep.subr.mxu0 0.0
    %458 = vmatpush1.msra.mxu0 %v435
    %459 = vmatprep.subr.mxu0 0.0
    %460 = vmatpush1.msra.mxu0 %v436
    %461 = vmatprep.subr.mxu0 0.0
    %462 = vmatpush1.msra.mxu0 %v437
    %463 = vmatprep.subr.mxu0 0.0
    %464 = vmatpush1.msra.mxu0 %v438
    %465 = vmatprep.subr.mxu0 0.0
    %466 = vmatpush1.msra.mxu0 %v439
    %467 = vmatprep.subr.mxu0 0.0
    %468 = vmatpush1.msra.mxu0 %v440
    %469 = vmatprep.subr.mxu0 0.0
    %470 = vmatpush1.msra.mxu0 %v441
    %471 = vmatprep.subr.mxu0 0.0
    %472 = vmatpush1.msra.mxu0 %v442
    %473 = vmatprep.subr.mxu0 0.0
    %474 = vmatpush1.msra.mxu0 %v443
    %475 = vmatprep.subr.mxu0 0.0
    %476 = vmatpush1.msra.mxu0 %v444
    %477 = vmatprep.subr.mxu0 0.0
    %478 = vmatpush1.msra.mxu0 0.0
    %479 = vmatprep.subr.mxu0 0.0
    %480 = vmatpush1.msra.mxu0 0.0
    %481 = vmatprep.subr.mxu0 0.0
    %482 = vmatpush1.msra.mxu0 0.0
    %483 = vmatprep.subr.mxu0 0.0
    %484 = vmatpush1.msra.mxu0 0.0
    %485 = vmatprep.subr.mxu0 0.0
    %486 = vmatpush1.msra.mxu0 0.0
    %487 = vmatprep.subr.mxu0 0.0
    %488 = vmatpush1.msra.mxu0 0.0
    %489 = vmatprep.subr.mxu0 0.0
    %490 = vmatpush1.msra.mxu0 0.0
    %491 = vmatprep.subr.mxu0 0.0
    %492 = vmatpush1.msra.mxu0 0.0
    %493 = vmatprep.subr.mxu0 0.0
    %494 = vmatpush1.msra.mxu0 0.0
    %495 = vmatprep.subr.mxu0 0.0
    %496 = vmatpush1.msra.mxu0 0.0
    %497 = vmatprep.subr.mxu0 0.0
    %498 = vmatpush1.msra.mxu0 0.0
    %499 = vmatprep.subr.mxu0 0.0
    %500 = vmatpush1.msra.mxu0 0.0
    %501 = vmatprep.subr.mxu0 0.0
    %502 = vmatpush1.msra.mxu0 0.0
    %503 = vmatprep.subr.mxu0 0.0
    %504 = vmatpush1.msra.mxu0 0.0
    %505 = vmatprep.subr.mxu0 0.0
    %506 = vmatpush1.msra.mxu0 0.0
    %507 = vmatprep.subr.mxu0 0.0
    %508 = vmatpush1.msra.mxu0 0.0
    %509 = vmatprep.mubr.f32.mxu0 0.0
    %510 = vmatmul.mubr.f32.gmra.mrb[0].mxu0 %v426
    %v511 = vpop.f32.mrb[0].mxu0
    %v512 = vadd.f32 0.0, %v511
    %v513 = vpop.f32.mrb[0].mxu0
    %514 = vdwg.mxu0
    %v515 = vadd.f32 %v353, %v512
    %v516 = vlaneseq
    %v517 = vshrl.u32 %v516, 7
    %v518 = vsub.s32 4, %v517
    %v519 = vrot.slane %v30, %v518
    %521 = vbcast.lane.b32.xlu0 %v519, 256
    %v522 = vpop.permute.xlu0 %521
    %v523 = vadd.f32 %v515, %v522
    %v524 = vrot.slane %v29, 6
    %vm525 = vcmask 15360
    %v526 = vsel %vm525, %v524, 0
    %vm528 = vcmask 1041408
    %v530 = vsel %vm528, %v523, 0
    %532 = vmatprep.subr.mxu0 0.0
    %533 = vmatpush1.msra.mxu0 %v530
    %534 = vmatprep.subr.mxu0 0.0
    %535 = vmatpush1.msra.mxu0 0.0
    %536 = vmatprep.subr.mxu0 0.0
    %537 = vmatpush1.msra.mxu0 0.0
    %538 = vmatprep.subr.mxu0 0.0
    %539 = vmatpush1.msra.mxu0 0.0
    %540 = vmatprep.subr.mxu0 0.0
    %541 = vmatpush1.msra.mxu0 0.0
    %542 = vmatprep.subr.mxu0 0.0
    %543 = vmatpush1.msra.mxu0 0.0
    %544 = vmatprep.subr.mxu0 0.0
    %545 = vmatpush1.msra.mxu0 0.0
    %546 = vmatprep.subr.mxu0 0.0
    %547 = vmatpush1.msra.mxu0 0.0
    %548 = vmatprep.subr.mxu0 0.0
    %549 = vmatpush1.msra.mxu0 0.0
    %550 = vmatprep.subr.mxu0 0.0
    %551 = vmatpush1.msra.mxu0 0.0
    %552 = vmatprep.subr.mxu0 0.0
    %553 = vmatpush1.msra.mxu0 0.0
    %554 = vmatprep.subr.mxu0 0.0
    %555 = vmatpush1.msra.mxu0 0.0
    %556 = vmatprep.subr.mxu0 0.0
    %557 = vmatpush1.msra.mxu0 0.0
    %558 = vmatprep.subr.mxu0 0.0
    %559 = vmatpush1.msra.mxu0 0.0
    %560 = vmatprep.subr.mxu0 0.0
    %561 = vmatpush1.msra.mxu0 0.0
    %562 = vmatprep.subr.mxu0 0.0
    %563 = vmatpush1.msra.mxu0 0.0
    %564 = vmatprep.subr.mxu0 0.0
    %565 = vmatpush1.msra.mxu0 0.0
    %566 = vmatprep.subr.mxu0 0.0
    %567 = vmatpush1.msra.mxu0 0.0
    %568 = vmatprep.subr.mxu0 0.0
    %569 = vmatpush1.msra.mxu0 0.0
    %570 = vmatprep.subr.mxu0 0.0
    %571 = vmatpush1.msra.mxu0 0.0
    %572 = vmatprep.subr.mxu0 0.0
    %573 = vmatpush1.msra.mxu0 0.0
    %574 = vmatprep.subr.mxu0 0.0
    %575 = vmatpush1.msra.mxu0 0.0
    %576 = vmatprep.subr.mxu0 0.0
    %577 = vmatpush1.msra.mxu0 0.0
    %578 = vmatprep.subr.mxu0 0.0
    %579 = vmatpush1.msra.mxu0 0.0
    %580 = vmatprep.subr.mxu0 0.0
    %581 = vmatpush1.msra.mxu0 0.0
    %582 = vmatprep.subr.mxu0 0.0
    %583 = vmatpush1.msra.mxu0 0.0
    %584 = vmatprep.subr.mxu0 0.0
    %585 = vmatpush1.msra.mxu0 0.0
    %586 = vmatprep.subr.mxu0 0.0
    %587 = vmatpush1.msra.mxu0 0.0
    %588 = vmatprep.subr.mxu0 0.0
    %589 = vmatpush1.msra.mxu0 0.0
    %590 = vmatprep.subr.mxu0 0.0
    %591 = vmatpush1.msra.mxu0 0.0
    %592 = vmatprep.subr.mxu0 0.0
    %593 = vmatpush1.msra.mxu0 0.0
    %594 = vmatprep.subr.mxu0 0.0
    %595 = vmatpush1.msra.mxu0 0.0
    %596 = vmatprep.mubr.f32.mxu0 0.0
    %597 = vmatmul.mubr.f32.gmra.mrb[0].mxu0 %v526
    %v598 = vpop.f32.mrb[0].mxu0
    %v599 = vadd.f32 0.0, %v598
    %v600 = vpop.f32.mrb[0].mxu0
    %601 = vdwg.mxu0
    %v603 = vsel %vm525, %v30, 0
    %605 = vmatprep.subr.mxu0 0.0
    %606 = vmatpush1.msra.mxu0 %v530
    %607 = vmatprep.subr.mxu0 0.0
    %608 = vmatpush1.msra.mxu0 0.0
    %609 = vmatprep.subr.mxu0 0.0
    %610 = vmatpush1.msra.mxu0 0.0
    %611 = vmatprep.subr.mxu0 0.0
    %612 = vmatpush1.msra.mxu0 0.0
    %613 = vmatprep.subr.mxu0 0.0
    %614 = vmatpush1.msra.mxu0 0.0
    %615 = vmatprep.subr.mxu0 0.0
    %616 = vmatpush1.msra.mxu0 0.0
    %617 = vmatprep.subr.mxu0 0.0
    %618 = vmatpush1.msra.mxu0 0.0
    %619 = vmatprep.subr.mxu0 0.0
    %620 = vmatpush1.msra.mxu0 0.0
    %621 = vmatprep.subr.mxu0 0.0
    %622 = vmatpush1.msra.mxu0 0.0
    %623 = vmatprep.subr.mxu0 0.0
    %624 = vmatpush1.msra.mxu0 0.0
    %625 = vmatprep.subr.mxu0 0.0
    %626 = vmatpush1.msra.mxu0 0.0
    %627 = vmatprep.subr.mxu0 0.0
    %628 = vmatpush1.msra.mxu0 0.0
    %629 = vmatprep.subr.mxu0 0.0
    %630 = vmatpush1.msra.mxu0 0.0
    %631 = vmatprep.subr.mxu0 0.0
    %632 = vmatpush1.msra.mxu0 0.0
    %633 = vmatprep.subr.mxu0 0.0
    %634 = vmatpush1.msra.mxu0 0.0
    %635 = vmatprep.subr.mxu0 0.0
    %636 = vmatpush1.msra.mxu0 0.0
    %637 = vmatprep.subr.mxu0 0.0
    %638 = vmatpush1.msra.mxu0 0.0
    %639 = vmatprep.subr.mxu0 0.0
    %640 = vmatpush1.msra.mxu0 0.0
    %641 = vmatprep.subr.mxu0 0.0
    %642 = vmatpush1.msra.mxu0 0.0
    %643 = vmatprep.subr.mxu0 0.0
    %644 = vmatpush1.msra.mxu0 0.0
    %645 = vmatprep.subr.mxu0 0.0
    %646 = vmatpush1.msra.mxu0 0.0
    %647 = vmatprep.subr.mxu0 0.0
    %648 = vmatpush1.msra.mxu0 0.0
    %649 = vmatprep.subr.mxu0 0.0
    %650 = vmatpush1.msra.mxu0 0.0
    %651 = vmatprep.subr.mxu0 0.0
    %652 = vmatpush1.msra.mxu0 0.0
    %653 = vmatprep.subr.mxu0 0.0
    %654 = vmatpush1.msra.mxu0 0.0
    %655 = vmatprep.subr.mxu0 0.0
    %656 = vmatpush1.msra.mxu0 0.0
    %657 = vmatprep.subr.mxu0 0.0
    %658 = vmatpush1.msra.mxu0 0.0
    %659 = vmatprep.subr.mxu0 0.0
    %660 = vmatpush1.msra.mxu0 0.0
    %661 = vmatprep.subr.mxu0 0.0
    %662 = vmatpush1.msra.mxu0 0.0
    %663 = vmatprep.subr.mxu0 0.0
    %664 = vmatpush1.msra.mxu0 0.0
    %665 = vmatprep.subr.mxu0 0.0
    %666 = vmatpush1.msra.mxu0 0.0
    %667 = vmatprep.subr.mxu0 0.0
    %668 = vmatpush1.msra.mxu0 0.0
    %669 = vmatprep.mubr.f32.mxu0 0.0
    %670 = vmatmul.mubr.f32.gmra.mrb[0].mxu0 %v603
    %v671 = vpop.f32.mrb[0].mxu0
    %v672 = vadd.f32 0.0, %v671
    %v673 = vpop.f32.mrb[0].mxu0
    %674 = vdwg.mxu0
    %675 = vmatprep.subr.mxu0 0.0
    %676 = vmatpush1.msra.mxu0 %v200
    %677 = vmatprep.subr.mxu0 0.0
    %678 = vmatpush1.msra.mxu0 %v201
    %679 = vmatprep.subr.mxu0 0.0
    %680 = vmatpush1.msra.mxu0 %v202
    %681 = vmatprep.subr.mxu0 0.0
    %682 = vmatpush1.msra.mxu0 %v203
    %683 = vmatprep.subr.mxu0 0.0
    %684 = vmatpush1.msra.mxu0 %v204
    %685 = vmatprep.subr.mxu0 0.0
    %686 = vmatpush1.msra.mxu0 %v205
    %687 = vmatprep.subr.mxu0 0.0
    %688 = vmatpush1.msra.mxu0 %v206
    %689 = vmatprep.subr.mxu0 0.0
    %690 = vmatpush1.msra.mxu0 %v207
    %691 = vmatprep.subr.mxu0 0.0
    %692 = vmatpush1.msra.mxu0 %v208
    %693 = vmatprep.subr.mxu0 0.0
    %694 = vmatpush1.msra.mxu0 %v209
    %695 = vmatprep.subr.mxu0 0.0
    %696 = vmatpush1.msra.mxu0 %v210
    %697 = vmatprep.subr.mxu0 0.0
    %698 = vmatpush1.msra.mxu0 %v211
    %699 = vmatprep.subr.mxu0 0.0
    %700 = vmatpush1.msra.mxu0 %v212
    %701 = vmatprep.subr.mxu0 0.0
    %702 = vmatpush1.msra.mxu0 %v213
    %703 = vmatprep.subr.mxu0 0.0
    %704 = vmatpush1.msra.mxu0 %v214
    %705 = vmatprep.subr.mxu0 0.0
    %706 = vmatpush1.msra.mxu0 %v215
    %707 = vmatprep.subr.mxu0 0.0
    %708 = vmatpush1.msra.mxu0 0.0
    %709 = vmatprep.subr.mxu0 0.0
    %710 = vmatpush1.msra.mxu0 0.0
    %711 = vmatprep.subr.mxu0 0.0
    %712 = vmatpush1.msra.mxu0 0.0
    %713 = vmatprep.subr.mxu0 0.0
    %714 = vmatpush1.msra.mxu0 0.0
    %715 = vmatprep.subr.mxu0 0.0
    %716 = vmatpush1.msra.mxu0 0.0
    %717 = vmatprep.subr.mxu0 0.0
    %718 = vmatpush1.msra.mxu0 0.0
    %719 = vmatprep.subr.mxu0 0.0
    %720 = vmatpush1.msra.mxu0 0.0
    %721 = vmatprep.subr.mxu0 0.0
    %722 = vmatpush1.msra.mxu0 0.0
    %723 = vmatprep.subr.mxu0 0.0
    %724 = vmatpush1.msra.mxu0 0.0
    %725 = vmatprep.subr.mxu0 0.0
    %726 = vmatpush1.msra.mxu0 0.0
    %727 = vmatprep.subr.mxu0 0.0
    %728 = vmatpush1.msra.mxu0 0.0
    %729 = vmatprep.subr.mxu0 0.0
    %730 = vmatpush1.msra.mxu0 0.0
    %731 = vmatprep.subr.mxu0 0.0
    %732 = vmatpush1.msra.mxu0 0.0
    %733 = vmatprep.subr.mxu0 0.0
    %734 = vmatpush1.msra.mxu0 0.0
    %735 = vmatprep.subr.mxu0 0.0
    %736 = vmatpush1.msra.mxu0 0.0
    %737 = vmatprep.subr.mxu0 0.0
    %738 = vmatpush1.msra.mxu0 0.0
    %739 = vmatprep.mubr.f32.mxu0 0.0
    %740 = vmatmul.mubr.f32.gmra.mrb[0].mxu0 %v672
    %v741 = vpop.f32.mrb[0].mxu0
    %v742 = vadd.f32 0.0, %v741
    %v743 = vpop.f32.mrb[0].mxu0
    %744 = vdwg.mxu0
    %745 = vmatprep.subr.mxu0 0.0
    %746 = vmatpush1.msra.mxu0 %v111
    %747 = vmatprep.subr.mxu0 0.0
    %748 = vmatpush1.msra.mxu0 %v112
    %749 = vmatprep.subr.mxu0 0.0
    %750 = vmatpush1.msra.mxu0 %v113
    %751 = vmatprep.subr.mxu0 0.0
    %752 = vmatpush1.msra.mxu0 %v114
    %753 = vmatprep.subr.mxu0 0.0
    %754 = vmatpush1.msra.mxu0 %v115
    %755 = vmatprep.subr.mxu0 0.0
    %756 = vmatpush1.msra.mxu0 %v116
    %757 = vmatprep.subr.mxu0 0.0
    %758 = vmatpush1.msra.mxu0 %v117
    %759 = vmatprep.subr.mxu0 0.0
    %760 = vmatpush1.msra.mxu0 %v118
    %761 = vmatprep.subr.mxu0 0.0
    %762 = vmatpush1.msra.mxu0 %v119
    %763 = vmatprep.subr.mxu0 0.0
    %764 = vmatpush1.msra.mxu0 %v120
    %765 = vmatprep.subr.mxu0 0.0
    %766 = vmatpush1.msra.mxu0 %v121
    %767 = vmatprep.subr.mxu0 0.0
    %768 = vmatpush1.msra.mxu0 %v122
    %769 = vmatprep.subr.mxu0 0.0
    %770 = vmatpush1.msra.mxu0 %v123
    %771 = vmatprep.subr.mxu0 0.0
    %772 = vmatpush1.msra.mxu0 %v124
    %773 = vmatprep.subr.mxu0 0.0
    %774 = vmatpush1.msra.mxu0 %v125
    %775 = vmatprep.subr.mxu0 0.0
    %776 = vmatpush1.msra.mxu0 %v126
    %777 = vmatprep.subr.mxu0 0.0
    %778 = vmatpush1.msra.mxu0 0.0
    %779 = vmatprep.subr.mxu0 0.0
    %780 = vmatpush1.msra.mxu0 0.0
    %781 = vmatprep.subr.mxu0 0.0
    %782 = vmatpush1.msra.mxu0 0.0
    %783 = vmatprep.subr.mxu0 0.0
    %784 = vmatpush1.msra.mxu0 0.0
    %785 = vmatprep.subr.mxu0 0.0
    %786 = vmatpush1.msra.mxu0 0.0
    %787 = vmatprep.subr.mxu0 0.0
    %788 = vmatpush1.msra.mxu0 0.0
    %789 = vmatprep.subr.mxu0 0.0
    %790 = vmatpush1.msra.mxu0 0.0
    %791 = vmatprep.subr.mxu0 0.0
    %792 = vmatpush1.msra.mxu0 0.0
    %793 = vmatprep.subr.mxu0 0.0
    %794 = vmatpush1.msra.mxu0 0.0
    %795 = vmatprep.subr.mxu0 0.0
    %796 = vmatpush1.msra.mxu0 0.0
    %797 = vmatprep.subr.mxu0 0.0
    %798 = vmatpush1.msra.mxu0 0.0
    %799 = vmatprep.subr.mxu0 0.0
    %800 = vmatpush1.msra.mxu0 0.0
    %801 = vmatprep.subr.mxu0 0.0
    %802 = vmatpush1.msra.mxu0 0.0
    %803 = vmatprep.subr.mxu0 0.0
    %804 = vmatpush1.msra.mxu0 0.0
    %805 = vmatprep.subr.mxu0 0.0
    %806 = vmatpush1.msra.mxu0 0.0
    %807 = vmatprep.subr.mxu0 0.0
    %808 = vmatpush1.msra.mxu0 0.0
    %809 = vmatprep.mubr.f32.mxu0 0.0
    %810 = vmatmul.mubr.f32.gmra.mrb[0].mxu0 %v599
    %v811 = vpop.f32.mrb[0].mxu0
    %v812 = vadd.f32 %v742, %v811
    %v813 = vpop.f32.mrb[0].mxu0
    %814 = vdwg.mxu0
    %v815 = vrot.slane %v30, 2
    %v816 = vsel %vm525, %v815, 0
    %818 = vmatprep.subr.mxu0 0.0
    %819 = vmatpush1.msra.mxu0 %v530
    %820 = vmatprep.subr.mxu0 0.0
    %821 = vmatpush1.msra.mxu0 0.0
    %822 = vmatprep.subr.mxu0 0.0
    %823 = vmatpush1.msra.mxu0 0.0
    %824 = vmatprep.subr.mxu0 0.0
    %825 = vmatpush1.msra.mxu0 0.0
    %826 = vmatprep.subr.mxu0 0.0
    %827 = vmatpush1.msra.mxu0 0.0
    %828 = vmatprep.subr.mxu0 0.0
    %829 = vmatpush1.msra.mxu0 0.0
    %830 = vmatprep.subr.mxu0 0.0
    %831 = vmatpush1.msra.mxu0 0.0
    %832 = vmatprep.subr.mxu0 0.0
    %833 = vmatpush1.msra.mxu0 0.0
    %834 = vmatprep.subr.mxu0 0.0
    %835 = vmatpush1.msra.mxu0 0.0
    %836 = vmatprep.subr.mxu0 0.0
    %837 = vmatpush1.msra.mxu0 0.0
    %838 = vmatprep.subr.mxu0 0.0
    %839 = vmatpush1.msra.mxu0 0.0
    %840 = vmatprep.subr.mxu0 0.0
    %841 = vmatpush1.msra.mxu0 0.0
    %842 = vmatprep.subr.mxu0 0.0
    %843 = vmatpush1.msra.mxu0 0.0
    %844 = vmatprep.subr.mxu0 0.0
    %845 = vmatpush1.msra.mxu0 0.0
    %846 = vmatprep.subr.mxu0 0.0
    %847 = vmatpush1.msra.mxu0 0.0
    %848 = vmatprep.subr.mxu0 0.0
    %849 = vmatpush1.msra.mxu0 0.0
    %850 = vmatprep.subr.mxu0 0.0
    %851 = vmatpush1.msra.mxu0 0.0
    %852 = vmatprep.subr.mxu0 0.0
    %853 = vmatpush1.msra.mxu0 0.0
    %854 = vmatprep.subr.mxu0 0.0
    %855 = vmatpush1.msra.mxu0 0.0
    %856 = vmatprep.subr.mxu0 0.0
    %857 = vmatpush1.msra.mxu0 0.0
    %858 = vmatprep.subr.mxu0 0.0
    %859 = vmatpush1.msra.mxu0 0.0
    %860 = vmatprep.subr.mxu0 0.0
    %861 = vmatpush1.msra.mxu0 0.0
    %862 = vmatprep.subr.mxu0 0.0
    %863 = vmatpush1.msra.mxu0 0.0
    %864 = vmatprep.subr.mxu0 0.0
    %865 = vmatpush1.msra.mxu0 0.0
    %866 = vmatprep.subr.mxu0 0.0
    %867 = vmatpush1.msra.mxu0 0.0
    %868 = vmatprep.subr.mxu0 0.0
    %869 = vmatpush1.msra.mxu0 0.0
    %870 = vmatprep.subr.mxu0 0.0
    %871 = vmatpush1.msra.mxu0 0.0
    %872 = vmatprep.subr.mxu0 0.0
    %873 = vmatpush1.msra.mxu0 0.0
    %874 = vmatprep.subr.mxu0 0.0
    %875 = vmatpush1.msra.mxu0 0.0
    %876 = vmatprep.subr.mxu0 0.0
    %877 = vmatpush1.msra.mxu0 0.0
    %878 = vmatprep.subr.mxu0 0.0
    %879 = vmatpush1.msra.mxu0 0.0
    %880 = vmatprep.subr.mxu0 0.0
    %881 = vmatpush1.msra.mxu0 0.0
    %882 = vmatprep.mubr.f32.mxu0 0.0
    %883 = vmatmul.mubr.f32.gmra.mrb[0].mxu0 %v816
    %v884 = vpop.f32.mrb[0].mxu0
    %v885 = vadd.f32 0.0, %v884
    %v886 = vpop.f32.mrb[0].mxu0
    %887 = vdwg.mxu0
    %888 = vmatprep.subr.mxu0 0.0
    %889 = vmatpush1.msra.mxu0 %v429
    %890 = vmatprep.subr.mxu0 0.0
    %891 = vmatpush1.msra.mxu0 %v430
    %892 = vmatprep.subr.mxu0 0.0
    %893 = vmatpush1.msra.mxu0 %v431
    %894 = vmatprep.subr.mxu0 0.0
    %895 = vmatpush1.msra.mxu0 %v432
    %896 = vmatprep.subr.mxu0 0.0
    %897 = vmatpush1.msra.mxu0 %v433
    %898 = vmatprep.subr.mxu0 0.0
    %899 = vmatpush1.msra.mxu0 %v434
    %900 = vmatprep.subr.mxu0 0.0
    %901 = vmatpush1.msra.mxu0 %v435
    %902 = vmatprep.subr.mxu0 0.0
    %903 = vmatpush1.msra.mxu0 %v436
    %904 = vmatprep.subr.mxu0 0.0
    %905 = vmatpush1.msra.mxu0 %v437
    %906 = vmatprep.subr.mxu0 0.0
    %907 = vmatpush1.msra.mxu0 %v438
    %908 = vmatprep.subr.mxu0 0.0
    %909 = vmatpush1.msra.mxu0 %v439
    %910 = vmatprep.subr.mxu0 0.0
    %911 = vmatpush1.msra.mxu0 %v440
    %912 = vmatprep.subr.mxu0 0.0
    %913 = vmatpush1.msra.mxu0 %v441
    %914 = vmatprep.subr.mxu0 0.0
    %915 = vmatpush1.msra.mxu0 %v442
    %916 = vmatprep.subr.mxu0 0.0
    %917 = vmatpush1.msra.mxu0 %v443
    %918 = vmatprep.subr.mxu0 0.0
    %919 = vmatpush1.msra.mxu0 %v444
    %920 = vmatprep.subr.mxu0 0.0
    %921 = vmatpush1.msra.mxu0 0.0
    %922 = vmatprep.subr.mxu0 0.0
    %923 = vmatpush1.msra.mxu0 0.0
    %924 = vmatprep.subr.mxu0 0.0
    %925 = vmatpush1.msra.mxu0 0.0
    %926 = vmatprep.subr.mxu0 0.0
    %927 = vmatpush1.msra.mxu0 0.0
    %928 = vmatprep.subr.mxu0 0.0
    %929 = vmatpush1.msra.mxu0 0.0
    %930 = vmatprep.subr.mxu0 0.0
    %931 = vmatpush1.msra.mxu0 0.0
    %932 = vmatprep.subr.mxu0 0.0
    %933 = vmatpush1.msra.mxu0 0.0
    %934 = vmatprep.subr.mxu0 0.0
    %935 = vmatpush1.msra.mxu0 0.0
    %936 = vmatprep.subr.mxu0 0.0
    %937 = vmatpush1.msra.mxu0 0.0
    %938 = vmatprep.subr.mxu0 0.0
    %939 = vmatpush1.msra.mxu0 0.0
    %940 = vmatprep.subr.mxu0 0.0
    %941 = vmatpush1.msra.mxu0 0.0
    %942 = vmatprep.subr.mxu0 0.0
    %943 = vmatpush1.msra.mxu0 0.0
    %944 = vmatprep.subr.mxu0 0.0
    %945 = vmatpush1.msra.mxu0 0.0
    %946 = vmatprep.subr.mxu0 0.0
    %947 = vmatpush1.msra.mxu0 0.0
    %948 = vmatprep.subr.mxu0 0.0
    %949 = vmatpush1.msra.mxu0 0.0
    %950 = vmatprep.subr.mxu0 0.0
    %951 = vmatpush1.msra.mxu0 0.0
    %952 = vmatprep.mubr.f32.mxu0 0.0
    %953 = vmatmul.mubr.f32.gmra.mrb[0].mxu0 %v885
    %v954 = vpop.f32.mrb[0].mxu0
    %v955 = vadd.f32 0.0, %v954
    %v956 = vpop.f32.mrb[0].mxu0
    %957 = vdwg.mxu0
    %v958 = vadd.f32 %v812, %v955
    %v959 = vlaneseq
    %v960 = vshrl.u32 %v959, 7
    %v961 = vsub.s32 5, %v960
    %v962 = vrot.slane %v30, %v961
    %964 = vbcast.lane.b32.xlu0 %v962, 256
    %v965 = vpop.permute.xlu0 %964
    %v966 = vadd.f32 %v958, %v965
    %968 = vrot.lane.b32.xlu0 %v966, 64
    %v969 = vpop.permute.xlu0 %968
    %v971 = vsel %vm525, %v31, 0
    %v973 = vsel %vm528, %v969, 0
    %975 = vmatprep.subr.mxu0 0.0
    %976 = vmatpush1.msra.mxu0 %v973
    %977 = vmatprep.subr.mxu0 0.0
    %978 = vmatpush1.msra.mxu0 0.0
    %979 = vmatprep.subr.mxu0 0.0
    %980 = vmatpush1.msra.mxu0 0.0
    %981 = vmatprep.subr.mxu0 0.0
    %982 = vmatpush1.msra.mxu0 0.0
    %983 = vmatprep.subr.mxu0 0.0
    %984 = vmatpush1.msra.mxu0 0.0
    %985 = vmatprep.subr.mxu0 0.0
    %986 = vmatpush1.msra.mxu0 0.0
    %987 = vmatprep.subr.mxu0 0.0
    %988 = vmatpush1.msra.mxu0 0.0
    %989 = vmatprep.subr.mxu0 0.0
    %990 = vmatpush1.msra.mxu0 0.0
    %991 = vmatprep.subr.mxu0 0.0
    %992 = vmatpush1.msra.mxu0 0.0
    %993 = vmatprep.subr.mxu0 0.0
    %994 = vmatpush1.msra.mxu0 0.0
    %995 = vmatprep.subr.mxu0 0.0
    %996 = vmatpush1.msra.mxu0 0.0
    %997 = vmatprep.subr.mxu0 0.0
    %998 = vmatpush1.msra.mxu0 0.0
    %999 = vmatprep.subr.mxu0 0.0
    %1000 = vmatpush1.msra.mxu0 0.0
    %1001 = vmatprep.subr.mxu0 0.0
    %1002 = vmatpush1.msra.mxu0 0.0
    %1003 = vmatprep.subr.mxu0 0.0
    %1004 = vmatpush1.msra.mxu0 0.0
    %1005 = vmatprep.subr.mxu0 0.0
    %1006 = vmatpush1.msra.mxu0 0.0
    %1007 = vmatprep.subr.mxu0 0.0
    %1008 = vmatpush1.msra.mxu0 0.0
    %1009 = vmatprep.subr.mxu0 0.0
    %1010 = vmatpush1.msra.mxu0 0.0
    %1011 = vmatprep.subr.mxu0 0.0
    %1012 = vmatpush1.msra.mxu0 0.0
    %1013 = vmatprep.subr.mxu0 0.0
    %1014 = vmatpush1.msra.mxu0 0.0
    %1015 = vmatprep.subr.mxu0 0.0
    %1016 = vmatpush1.msra.mxu0 0.0
    %1017 = vmatprep.subr.mxu0 0.0
    %1018 = vmatpush1.msra.mxu0 0.0
    %1019 = vmatprep.subr.mxu0 0.0
    %1020 = vmatpush1.msra.mxu0 0.0
    %1021 = vmatprep.subr.mxu0 0.0
    %1022 = vmatpush1.msra.mxu0 0.0
    %1023 = vmatprep.subr.mxu0 0.0
    %1024 = vmatpush1.msra.mxu0 0.0
    %1025 = vmatprep.subr.mxu0 0.0
    %1026 = vmatpush1.msra.mxu0 0.0
    %1027 = vmatprep.subr.mxu0 0.0
    %1028 = vmatpush1.msra.mxu0 0.0
    %1029 = vmatprep.subr.mxu0 0.0
    %1030 = vmatpush1.msra.mxu0 0.0
    %1031 = vmatprep.subr.mxu0 0.0
    %1032 = vmatpush1.msra.mxu0 0.0
    %1033 = vmatprep.subr.mxu0 0.0
    %1034 = vmatpush1.msra.mxu0 0.0
    %1035 = vmatprep.subr.mxu0 0.0
    %1036 = vmatpush1.msra.mxu0 0.0
    %1037 = vmatprep.subr.mxu0 0.0
    %1038 = vmatpush1.msra.mxu0 0.0
    %1039 = vmatprep.mubr.f32.mxu0 0.0
    %1040 = vmatmul.mubr.f32.gmra.mrb[0].mxu0 %v971
    %v1041 = vpop.f32.mrb[0].mxu0
    %v1042 = vadd.f32 0.0, %v1041
    %v1043 = vpop.f32.mrb[0].mxu0
    %1044 = vdwg.mxu0
    %v1045 = vrot.slane %v30, 6
    %v1046 = vsel %vm525, %v1045, 0
    %v1048 = vsel %vm528, %v966, 0
    %1050 = vmatprep.subr.mxu0 0.0
    %1051 = vmatpush1.msra.mxu0 %v1048
    %1052 = vmatprep.subr.mxu0 0.0
    %1053 = vmatpush1.msra.mxu0 0.0
    %1054 = vmatprep.subr.mxu0 0.0
    %1055 = vmatpush1.msra.mxu0 0.0
    %1056 = vmatprep.subr.mxu0 0.0
    %1057 = vmatpush1.msra.mxu0 0.0
    %1058 = vmatprep.subr.mxu0 0.0
    %1059 = vmatpush1.msra.mxu0 0.0
    %1060 = vmatprep.subr.mxu0 0.0
    %1061 = vmatpush1.msra.mxu0 0.0
    %1062 = vmatprep.subr.mxu0 0.0
    %1063 = vmatpush1.msra.mxu0 0.0
    %1064 = vmatprep.subr.mxu0 0.0
    %1065 = vmatpush1.msra.mxu0 0.0
    %1066 = vmatprep.subr.mxu0 0.0
    %1067 = vmatpush1.msra.mxu0 0.0
    %1068 = vmatprep.subr.mxu0 0.0
    %1069 = vmatpush1.msra.mxu0 0.0
    %1070 = vmatprep.subr.mxu0 0.0
    %1071 = vmatpush1.msra.mxu0 0.0
    %1072 = vmatprep.subr.mxu0 0.0
    %1073 = vmatpush1.msra.mxu0 0.0
    %1074 = vmatprep.subr.mxu0 0.0
    %1075 = vmatpush1.msra.mxu0 0.0
    %1076 = vmatprep.subr.mxu0 0.0
    %1077 = vmatpush1.msra.mxu0 0.0
    %1078 = vmatprep.subr.mxu0 0.0
    %1079 = vmatpush1.msra.mxu0 0.0
    %1080 = vmatprep.subr.mxu0 0.0
    %1081 = vmatpush1.msra.mxu0 0.0
    %1082 = vmatprep.subr.mxu0 0.0
    %1083 = vmatpush1.msra.mxu0 0.0
    %1084 = vmatprep.subr.mxu0 0.0
    %1085 = vmatpush1.msra.mxu0 0.0
    %1086 = vmatprep.subr.mxu0 0.0
    %1087 = vmatpush1.msra.mxu0 0.0
    %1088 = vmatprep.subr.mxu0 0.0
    %1089 = vmatpush1.msra.mxu0 0.0
    %1090 = vmatprep.subr.mxu0 0.0
    %1091 = vmatpush1.msra.mxu0 0.0
    %1092 = vmatprep.subr.mxu0 0.0
    %1093 = vmatpush1.msra.mxu0 0.0
    %1094 = vmatprep.subr.mxu0 0.0
    %1095 = vmatpush1.msra.mxu0 0.0
    %1096 = vmatprep.subr.mxu0 0.0
    %1097 = vmatpush1.msra.mxu0 0.0
    %1098 = vmatprep.subr.mxu0 0.0
    %1099 = vmatpush1.msra.mxu0 0.0
    %1100 = vmatprep.subr.mxu0 0.0
    %1101 = vmatpush1.msra.mxu0 0.0
    %1102 = vmatprep.subr.mxu0 0.0
    %1103 = vmatpush1.msra.mxu0 0.0
    %1104 = vmatprep.subr.mxu0 0.0
    %1105 = vmatpush1.msra.mxu0 0.0
    %1106 = vmatprep.subr.mxu0 0.0
    %1107 = vmatpush1.msra.mxu0 0.0
    %1108 = vmatprep.subr.mxu0 0.0
    %1109 = vmatpush1.msra.mxu0 0.0
    %1110 = vmatprep.subr.mxu0 0.0
    %1111 = vmatpush1.msra.mxu0 0.0
    %1112 = vmatprep.subr.mxu0 0.0
    %1113 = vmatpush1.msra.mxu0 0.0
    %1114 = vmatprep.mubr.f32.mxu0 0.0
    %1115 = vmatmul.mubr.f32.gmra.mrb[0].mxu0 %v1046
    %v1116 = vpop.f32.mrb[0].mxu0
    %v1117 = vadd.f32 %v1042, %v1116
    %v1118 = vpop.f32.mrb[0].mxu0
    %1119 = vdwg.mxu0
    %v1120 = vlaneseq
    %v1121 = vshrl.u32 %v1120, 7
    %v1122 = vsub.s32 2, %v1121
    %v1123 = vrot.slane %v31, %v1122
    %1125 = vbcast.lane.b32.xlu0 %v1123, 256
    %v1126 = vpop.permute.xlu0 %1125
    %v1127 = vadd.f32 %v1117, %v1126
    %vm1128 = vcmask 517120
    %v1129 = vsel %vm1128, %v1127, -inf
    %v1130 = vrot.slane %v1129, 4
    %v1131 = vmax.f32 %v1129, %v1130
    %v1132 = vrot.slane %v1131, 2
    %v1133 = vmax.f32 %v1131, %v1132
    %v1134 = vrot.slane %v1133, 1
    %v1135 = vmax.f32 %v1133, %v1134
    %v1136 = vsub.f32 %v1127, %v1135
    %v1137 = vmul.f32 %v1136, 1.442695
    %v1138 = vpow.pop %v1137
    %v1139 = vsel %vm1128, %v1138, 0.0
    %v1140 = vrot.slane %v1139, 4
    %v1141 = vadd.f32 %v1139, %v1140
    %v1142 = vrot.slane %v1141, 2
    %v1143 = vadd.f32 %v1141, %v1142
    %v1144 = vrot.slane %v1143, 1
    %v1145 = vadd.f32 %v1143, %v1144
    %v1146 = vlog2.pop %v1145
    %v1147 = vmul.f32 %v1146, 0.6931472
    %v1148 = vsub.f32 %v1136, %v1147
    %1149 = vst.msk [vmem:[#allocation5] sm:$0x3] %vm1128, %v1148
    // Predicated region
    $region18: #{tpu_custom_call.1} parent=1 // pred_check
      _
    $region19: #{tpu_custom_call.1} parent=1 // pred_check_branch
      %1151 = sbr.rel (0) target = $region21
    $region20: #{tpu_custom_call.1} parent=1 // pred_region
      %s1153 = ssub.s32 32, 32
      %1154 = vsyncadd [#allocation4], %s1153
      %s1156 = sshll.u32 [#allocation5], 4
      %s1157 = int_to_ptr.vmem [resolvable:$true] %s1156
      %1159 = dma.vmem_to_hbm [thread:$0]  %s1157, 32, %s3, [#allocation4]
    $region21: #{tpu_custom_call.1} parent=1 // pred_fallthru
      _
    // Predicated region
    $region22: #{tpu_custom_call.1} parent=1 // pred_check
      _
    $region23: #{tpu_custom_call.1} parent=1 // pred_check_branch
      %1161 = sbr.rel (0) target = $region25
    $region24: #{tpu_custom_call.1} parent=1 // pred_region
      %1162 = dma.done [#allocation4], 32
    $region25: #{tpu_custom_call.1} parent=1 // pred_fallthru
      _
    %1163 = vsyncpa [#allocation3], 1
    %1164 = vsyncpa [#allocation4], 1

</llo_original>
